<compile_context>
chip_gen: v6e
topology: v6e:2x2x1
jax: 0.10.0
libtpu: 0.0.40
codegen_flags: <defaults>
</compile_context>

<pallas_src>
import functools

import jax
import jax.numpy as jnp
from jax.experimental import pallas as pl
from jax.experimental.pallas import tpu as pltpu


_LANE = 128
# Conservative tile budget (double-buffered in + out tiles): fits every generation,
# including v7x (64 MiB physical / 32 MiB scoped default).
_VMEM_TILE_BUDGET = 24 * 1024 * 1024
_VMEM_LIMIT_BYTES = 48 * 1024 * 1024


def _round_up(x, m):
    return (x + m - 1) // m * m


def _row_align(dtype):
    # Sublane packing: 32-bit -> 8 rows/vreg, 16-bit -> 16, 8-bit -> 32.
    return {4: 8, 2: 16, 1: 32}.get(jnp.dtype(dtype).itemsize, 8)


def _choose_tc(bc, hw_pad, dtype):
    """Largest row-tile (multiple of the sublane packing) fitting the VMEM budget."""
    align = _row_align(dtype)
    itemsize = jnp.dtype(dtype).itemsize
    # Per row: double-buffered input tile + double-buffered output tile.
    per_row = 2 * hw_pad * itemsize * 2
    max_rows = max(align, (_VMEM_TILE_BUDGET // per_row) // align * align)
    bc_ceil = _round_up(bc, align)
    tc = min(max_rows, bc_ceil)
    # Prefer >= 2 grid steps so DMA/compute pipelining and megacore sharding engage.
    if bc_ceil > align and tc >= bc_ceil:
        tc = max(align, min(tc, _round_up((bc_ceil + 1) // 2, align)))
    return tc


def _adain_kernel(x_ref, w_ref, b_ref, o_ref, *, eps, hw_true, tc):
    # x_ref / o_ref: (TC, HW_pad) tile of rows.  w_ref / b_ref: full (BC_pad, 1)
    # arrays, VMEM-resident across all grid steps (constant index_map).
    i = pl.program_id(0)
    x = x_ref[...].astype(jnp.float32)

    # Single pass over the tile: zero-padded lanes/rows contribute nothing to the
    # sums; divide by the *true* spatial size.
    inv_n = jnp.float32(1.0 / hw_true)
    s1 = jnp.sum(x, axis=-1, keepdims=True)
    s2 = jnp.sum(x * x, axis=-1, keepdims=True)
    mean = s1 * inv_n
    var = jnp.maximum(s2 * inv_n - mean * mean, 0.0)   # biased variance
    inv = jax.lax.rsqrt(var + jnp.float32(eps))

    r0 = pl.multiple_of(i * tc, tc)
    w = w_ref[pl.ds(r0, tc), :].astype(jnp.float32)
    b = b_ref[pl.ds(r0, tc), :].astype(jnp.float32)

    o_ref[...] = ((x - mean) * (inv * w) + b).astype(o_ref.dtype)


def adaptive_instance_norm_2d(x, weight, bias, eps=1e-5):
    """x: (B, C, H, W); weight, bias: (B*C,).  Returns (B, C, H, W)."""
    B, C, H, W = x.shape
    BC, HW = B * C, H * W
    dtype = x.dtype

    hw_pad = _round_up(HW, _LANE)          # lane-dense output stores
    tc = _choose_tc(BC, hw_pad, dtype)
    bc_pad = _round_up(BC, tc)
    grid = bc_pad // tc

    x2 = x.reshape(BC, HW)
    if bc_pad != BC or hw_pad != HW:
        x2 = jnp.pad(x2, ((0, bc_pad - BC), (0, hw_pad - HW)))
    w2 = jnp.pad(weight.reshape(BC, 1), ((0, bc_pad - BC), (0, 0)))
    b2 = jnp.pad(bias.reshape(BC, 1), ((0, bc_pad - BC), (0, 0)))

    kernel = functools.partial(_adain_kernel, eps=float(eps), hw_true=float(HW), tc=tc)

    out2 = pl.pallas_call(
        kernel,
        out_shape=jax.ShapeDtypeStruct((bc_pad, hw_pad), dtype),
        grid_spec=pltpu.PrefetchScalarGridSpec(
            num_scalar_prefetch=0,
            grid=(grid,),
            in_specs=[
                pl.BlockSpec((tc, hw_pad), lambda i: (i, 0)),
                pl.BlockSpec((bc_pad, 1), lambda i: (0, 0)),   # resident weight
                pl.BlockSpec((bc_pad, 1), lambda i: (0, 0)),   # resident bias
            ],
            out_specs=pl.BlockSpec((tc, hw_pad), lambda i: (i, 0)),
        ),
        compiler_params=pltpu.CompilerParams(
            dimension_semantics=("parallel",),
            vmem_limit_bytes=_VMEM_LIMIT_BYTES,
        ),
        input_output_aliases={0: 0},   # donate the (padded) input slab
    )(x2, w2, b2)

    if bc_pad != BC or hw_pad != HW:
        out2 = out2[:BC, :HW]
    return out2.reshape(B, C, H, W)


def _reference(x, weight, bias, eps=1e-5):
    B, C, H, W = x.shape
    xr = x.reshape(B * C, H * W).astype(jnp.float32)
    mean = xr.mean(axis=1, keepdims=True)
    var = ((xr - mean) ** 2).mean(axis=1, keepdims=True)
    out = (xr - mean) / jnp.sqrt(var + eps)
    out = out * weight.reshape(-1, 1) + bias.reshape(-1, 1)
    return out.reshape(B, C, H, W).astype(x.dtype)


if __name__ == "__main__":
    B, C, H, W = 2, 4, 16, 16

    key = jax.random.PRNGKey(0)
    kx, kw, kb = jax.random.split(key, 3)

    x = jax.random.normal(kx, (B, C, H, W), dtype=jnp.float32)
    # AdaIN weight/bias are assigned externally before forward, shape (B*C,).
    weight = jax.random.normal(kw, (B * C,), dtype=jnp.float32) * 0.5 + 1.0
    bias = jax.random.normal(kb, (B * C,), dtype=jnp.float32) * 0.1

    out = adaptive_instance_norm_2d(x, weight, bias, eps=1e-5)
    out = jax.block_until_ready(out)

    ref = _reference(x, weight, bias, eps=1e-5)
    assert out.shape == (B, C, H, W)
    assert jnp.allclose(out, ref, atol=1e-4, rtol=1e-4)

    print("KERNEL_OK")
</pallas_src>

<mosaic_0001>
module attributes {stable_mosaic.version = 11 : i64} {
  func.func @_adain_kernel(%arg0: i32, %arg1: memref<8x256xf32, #tpu.memory_space<vmem>>, %arg2: memref<8x1xf32, #tpu.memory_space<vmem>>, %arg3: memref<8x1xf32, #tpu.memory_space<vmem>>, %arg4: memref<8x256xf32, #tpu.memory_space<vmem>>) attributes {dimension_semantics = [#tpu.dimension_semantics<parallel>], iteration_bounds = array<i64: 1>, scalar_prefetch = 0 : i64, scratch_operands = 0 : i64, tpu.core_type = #tpu.core_type<tc>, window_params = [{transform_indices = @transform_0, window_bounds = array<i64: 8, 256>}, {pipeline_mode = #tpu.pipeline_mode<synchronous>, transform_indices = @transform_1, window_bounds = array<i64: 8, 1>}, {pipeline_mode = #tpu.pipeline_mode<synchronous>, transform_indices = @transform_2, window_bounds = array<i64: 8, 1>}, {transform_indices = @transform_3, window_bounds = array<i64: 8, 256>}]} {
    %c0 = arith.constant 0 : index
    %c0_0 = arith.constant 0 : index
    %0 = vector.load %arg1[%c0, %c0_0] : memref<8x256xf32, #tpu.memory_space<vmem>>, vector<8x256xf32>
    %cst = arith.constant dense<0.000000e+00> : vector<8xf32>
    %1 = vector.multi_reduction <add>, %0, %cst [1] : vector<8x256xf32> to vector<8xf32>
    %2 = vector.shape_cast %1 : vector<8xf32> to vector<8x1xf32>
    %3 = arith.mulf %0, %0 : vector<8x256xf32>
    %cst_1 = arith.constant dense<0.000000e+00> : vector<8xf32>
    %4 = vector.multi_reduction <add>, %3, %cst_1 [1] : vector<8x256xf32> to vector<8xf32>
    %5 = vector.shape_cast %4 : vector<8xf32> to vector<8x1xf32>
    %cst_2 = arith.constant 3.906250e-03 : f32
    %6 = vector.broadcast %cst_2 : f32 to vector<8x1xf32>
    %7 = arith.mulf %2, %6 : vector<8x1xf32>
    %cst_3 = arith.constant 3.906250e-03 : f32
    %8 = vector.broadcast %cst_3 : f32 to vector<8x1xf32>
    %9 = arith.mulf %5, %8 : vector<8x1xf32>
    %10 = arith.mulf %7, %7 : vector<8x1xf32>
    %11 = arith.subf %9, %10 : vector<8x1xf32>
    %cst_4 = arith.constant 0.000000e+00 : f32
    %12 = vector.broadcast %cst_4 : f32 to vector<8x1xf32>
    %13 = arith.maximumf %11, %12 : vector<8x1xf32>
    %cst_5 = arith.constant 9.99999974E-6 : f32
    %14 = vector.broadcast %cst_5 : f32 to vector<8x1xf32>
    %15 = arith.addf %13, %14 : vector<8x1xf32>
    %16 = math.rsqrt %15 : vector<8x1xf32>
    %c8_i32 = arith.constant 8 : i32
    %17 = arith.muli %arg0, %c8_i32 : i32
    %18 = tpu.assume_multiple %17, 8 : i32
    %19 = arith.index_cast %18 : i32 to index
    %c0_6 = arith.constant 0 : index
    %20 = vector.load %arg2[%19, %c0_6] : memref<8x1xf32, #tpu.memory_space<vmem>>, vector<8x1xf32>
    %21 = arith.index_cast %18 : i32 to index
    %c0_7 = arith.constant 0 : index
    %22 = vector.load %arg3[%21, %c0_7] : memref<8x1xf32, #tpu.memory_space<vmem>>, vector<8x1xf32>
    %23 = vector.broadcast %7 : vector<8x1xf32> to vector<8x256xf32>
    %24 = arith.subf %0, %23 : vector<8x256xf32>
    %25 = arith.mulf %16, %20 : vector<8x1xf32>
    %26 = vector.broadcast %25 : vector<8x1xf32> to vector<8x256xf32>
    %27 = arith.mulf %24, %26 : vector<8x256xf32>
    %28 = vector.broadcast %22 : vector<8x1xf32> to vector<8x256xf32>
    %29 = arith.addf %27, %28 : vector<8x256xf32>
    %c0_8 = arith.constant 0 : index
    %c0_9 = arith.constant 0 : index
    %30 = vector.load %arg4[%c0_8, %c0_9] : memref<8x256xf32, #tpu.memory_space<vmem>>, vector<8x256xf32>
    tpu.vector_store %arg4[%c0_8, %c0_9], %29 {strides = array<i32>} : memref<8x256xf32, #tpu.memory_space<vmem>>, vector<8x256xf32>,
    return
  }
  func.func @transform_0(%arg0: i32) -> (i32, i32) {
    %c0_i32 = arith.constant 0 : i32
    %c0_i32_0 = arith.constant 0 : i32
    return %arg0, %c0_i32 : i32, i32
  }
  func.func @transform_1(%arg0: i32) -> (i32, i32) {
    %c0_i32 = arith.constant 0 : i32
    %c0_i32_0 = arith.constant 0 : i32
    %c0_i32_1 = arith.constant 0 : i32
    return %c0_i32, %c0_i32_0 : i32, i32
  }
  func.func @transform_2(%arg0: i32) -> (i32, i32) {
    %c0_i32 = arith.constant 0 : i32
    %c0_i32_0 = arith.constant 0 : i32
    %c0_i32_1 = arith.constant 0 : i32
    return %c0_i32, %c0_i32_0 : i32, i32
  }
  func.func @transform_3(%arg0: i32) -> (i32, i32) {
    %c0_i32 = arith.constant 0 : i32
    %c0_i32_0 = arith.constant 0 : i32
    return %arg0, %c0_i32 : i32, i32
  }
}

</mosaic_0001>

<llo_original>
// kernel: tpu_custom_call.1
$region0: #{tpu_custom_call.1}
  #allocation0 [shape = 'u32[]', space=smem, size = 0x4, offset = 0x4, fixed_abs, tag = 'smem constant byte address 0x4 - core index']
  #allocation1 [shape = 'u32[144,128]{1,0:T(1,128)}', space=vmem, size = 0x12000, scoped, tag = 'internal scratch']
  %s0 = inlined_call_operand.hbm [shape: f32[8,256], index: 0, kind: input, shape index: {}, may-alias: {0,3}]
  %s1 = inlined_call_operand.vmem [shape: f32[8,1], index: 1, kind: input, shape index: {}]
  %s2 = inlined_call_operand.vmem [shape: f32[8,1], index: 2, kind: input, shape index: {}]
  %s3 = inlined_call_operand.hbm [shape: f32[8,256], index: 3, kind: output, shape index: {}, may-alias: {0,3}]
  %s4 = sld [smem:[#allocation0]]
  $region26: #{tpu_custom_call.1} parent=0
    _
  %s6 = ssub.s32 1, %s4
  %s7 = scalar_select 0, %s6, %s4
  $region1: #{tpu_custom_call.1} parent=0
    #allocation2 [shape = 'u8[8192]{0}', space=vmem, size = 0x2000, scoped, tag = 'input window, operand 0, single buffered']
    #allocation3 [shape = 's32[1]{0}', space=sflag, size = 0x4, scoped, tag = 'scoped memory for tpu_custom_call.1']
    #allocation4 [shape = 's32[1]{0}', space=sflag, size = 0x4, scoped, tag = 'scoped memory for tpu_custom_call.1']
    #allocation5 [shape = 'u8[8192]{0}', space=vmem, size = 0x2000, scoped, tag = 'output window, operand 0, single buffered']
    %8 = vsyncpa [#allocation3], 0
    %9 = vsyncpa [#allocation4], 0
    // Predicated region
    $region2: #{tpu_custom_call.1} parent=1 // pred_check
      _
    $region3: #{tpu_custom_call.1} parent=1 // pred_check_branch
      %11 = sbr.rel (0) target = $region5
    $region4: #{tpu_custom_call.1} parent=1 // pred_region
      %s13 = ssub.s32 256, 256
      %14 = vsyncadd [#allocation3], %s13
      %s16 = sshll.u32 [#allocation2], 4
      %s17 = int_to_ptr.vmem [resolvable:$true] %s16
      %19 = dma.hbm_to_vmem [thread:$0]  %s0, 256, %s17, [#allocation3]
    $region5: #{tpu_custom_call.1} parent=1 // pred_fallthru
      _
    // Predicated region
    $region6: #{tpu_custom_call.1} parent=1 // pred_check
      _
    $region7: #{tpu_custom_call.1} parent=1 // pred_check_branch
      %21 = sbr.rel (0) target = $region9
    $region8: #{tpu_custom_call.1} parent=1 // pred_region
      _
    $region9: #{tpu_custom_call.1} parent=1 // pred_fallthru
      _
    // Predicated region
    $region10: #{tpu_custom_call.1} parent=1 // pred_check
      _
    $region11: #{tpu_custom_call.1} parent=1 // pred_check_branch
      %23 = sbr.rel (0) target = $region13
    $region12: #{tpu_custom_call.1} parent=1 // pred_region
      _
    $region13: #{tpu_custom_call.1} parent=1 // pred_fallthru
      _
    // Predicated region
    $region14: #{tpu_custom_call.1} parent=1 // pred_check
      _
    $region15: #{tpu_custom_call.1} parent=1 // pred_check_branch
      %25 = sbr.rel (0) target = $region17
    $region16: #{tpu_custom_call.1} parent=1 // pred_region
      %26 = dma.done [#allocation3], 256
    $region17: #{tpu_custom_call.1} parent=1 // pred_fallthru
      _
    %v27 = vld [vmem:[#allocation2] sm:$0xff]
    %v28 = vld [vmem:[#allocation2 + $0x8] sm:$0xff]
    %v29 = vadd.f32 %v27, %v28
    %30 = vadd.xlane.f32.xlu0 %v29
    %v31 = vpop.xlane.xlu0 %30
    %v32 = vmul.f32 %v27, %v27
    %v33 = vmul.f32 %v28, %v28
    %v34 = vadd.f32 %v32, %v33
    %35 = vadd.xlane.f32.xlu0 %v34
    %v36 = vpop.xlane.xlu0 %35
    %v37 = vmul.f32 %v31, 0.00390625
    %v38 = vmul.f32 %v36, 0.00390625
    %v39 = vmul.f32 %v37, %v37
    %v40 = vsub.f32 %v38, %v39
    %v41 = vmax.f32 %v40, 0.0
    %v42 = vadd.f32 %v41, 1e-05
    %v43 = vrsqrt.pop %v42
    %s44 = smul.u32 0, 8
    %s45 = scalar_lea.vmem %s1, %s44
    %v46 = vld [vmem:[%s45] sm:$0xff]
    %s47 = scalar_lea.vmem %s2, %s44
    %v48 = vld [vmem:[%s47] sm:$0xff]
    %v49 = vsub.f32 %v27, %v37
    %v50 = vsub.f32 %v28, %v37
    %v51 = vmul.f32 %v43, %v46
    %53 = vset.pattern.permute.xlu0 0
    %54 = vperm.xlu0 %53, %v51
    %v55 = vpop.permute.xlu0 %54
    %v57 = vmul.f32 %v49, %v55
    %v58 = vmul.f32 %v50, %v55
    %60 = vset.pattern.permute.xlu0 0
    %61 = vperm.xlu0 %60, %v48
    %v62 = vpop.permute.xlu0 %61
    %v64 = vadd.f32 %v57, %v62
    %v65 = vadd.f32 %v58, %v62
    %66 = vst [vmem:[#allocation5] sm:$0xff] %v64
    %67 = vst [vmem:[#allocation5 + $0x8] sm:$0xff] %v65
    // Predicated region
    $region18: #{tpu_custom_call.1} parent=1 // pred_check
      _
    $region19: #{tpu_custom_call.1} parent=1 // pred_check_branch
      %69 = sbr.rel (0) target = $region21
    $region20: #{tpu_custom_call.1} parent=1 // pred_region
      %s71 = ssub.s32 256, 256
      %72 = vsyncadd [#allocation4], %s71
      %s74 = sshll.u32 [#allocation5], 4
      %s75 = int_to_ptr.vmem [resolvable:$true] %s74
      %77 = dma.vmem_to_hbm [thread:$0]  %s75, 256, %s3, [#allocation4]
    $region21: #{tpu_custom_call.1} parent=1 // pred_fallthru
      _
    // Predicated region
    $region22: #{tpu_custom_call.1} parent=1 // pred_check
      _
    $region23: #{tpu_custom_call.1} parent=1 // pred_check_branch
      %79 = sbr.rel (0) target = $region25
    $region24: #{tpu_custom_call.1} parent=1 // pred_region
      %80 = dma.done [#allocation4], 256
    $region25: #{tpu_custom_call.1} parent=1 // pred_fallthru
      _
    %81 = vsyncpa [#allocation3], 1
    %82 = vsyncpa [#allocation4], 1

</llo_original>
